<compile_context>
chip_gen: v7x
topology: tpu7x:2x2x1
jax: 0.10.0
libtpu: 0.0.40
codegen_flags: <defaults>
</compile_context>

<pallas_src>
import jax
import jax.numpy as jnp
from jax.experimental import pallas as pl
from jax.experimental.pallas import tpu as pltpu


def _kernel_weight_kernel(x_ref, w_ref, o_ref):
    # x_ref: (K, tn) tile of the flattened input
    # w_ref: (K, 1) resident weight, already in the output/compute dtype
    # o_ref: (K, tn) output tile in the promoted dtype
    o_ref[...] = x_ref[...].astype(o_ref.dtype) * w_ref[...]


def _round_down_128(v):
    return (v // 128) * 128


def _vmem_capacity_bytes():
    """Per-core VMEM capacity; conservative (v7x = 64 MiB) if the query fails."""
    try:
        return int(pltpu.get_tpu_info().vmem_capacity_bytes)
    except Exception:
        return 64 << 20


def _choose_tile_n(K, N, buf_itemsize, *, target_bytes, min_steps=16, min_lanes=512):
    """Pick a lane-dense tile width tn (multiple of 128) along the flattened N axis.

    Priorities:
      1. Hard cap: K * tn * buf_itemsize <= target_bytes (per live buffer).
      2. Prefer grid depth >= min_steps (pipelining + both v7x TensorCores),
         i.e. tn <= floor128(N / min_steps) when that is feasible.
      3. But never shrink below ~min_lanes lanes (DMA-efficiency plateau),
         unless the whole array is narrower than that.
    The last (partial) block, if any, is padded/masked by Pallas.
    """
    n_pad = pl.cdiv(N, 128) * 128
    tn_cap = max(128, min(n_pad, _round_down_128(target_bytes // max(1, K * buf_itemsize))))
    tn_depth = max(128, _round_down_128(N // min_steps))
    tn = min(tn_cap, tn_depth)                      # depth-preferred
    tn = max(tn, min(min_lanes, n_pad, tn_cap))     # ...but not below the lane floor
    return int(tn)


def kernel_weight_forward(x, it_weights, *, donate_input=False):
    """Pallas implementation of: y = x * it_weights (it_weights: (K,1,1,1)).

    Output dtype follows PyTorch promotion: result_type(x.dtype, it_weights.dtype).
    """
    K, C, H, W = x.shape
    assert it_weights.shape == (K, 1, 1, 1)
    N = C * H * W

    out_dtype = jnp.result_type(x.dtype, it_weights.dtype)

    x2 = x.reshape(K, N)
    # Pre-cast the tiny resident weight once in the wrapper => single-vmul body.
    w2 = it_weights.reshape(K, 1).astype(out_dtype)

    x_itemsize = jnp.dtype(x.dtype).itemsize
    out_itemsize = jnp.dtype(out_dtype).itemsize

    vmem_cap = _vmem_capacity_bytes()
    target_bytes = min(8 << 20, max(2 << 20, vmem_cap // 10))
    tn = _choose_tile_n(K, N, max(x_itemsize, out_itemsize), target_bytes=target_bytes)
    grid_n = int(pl.cdiv(N, tn))  # final partial block (if any) is masked by Pallas

    # Scoped-VMEM budget: 2x input + 2x output double buffers + resident weight + slack.
    in_tile_bytes = K * tn * x_itemsize
    out_tile_bytes = K * tn * out_itemsize
    w_bytes = K * 128 * out_itemsize  # lane-padded, tiny
    needed = 2 * (in_tile_bytes + out_tile_bytes) + 2 * w_bytes + (2 << 20)
    vmem_limit = int(min(max(needed, 16 << 20), int(0.75 * vmem_cap)))

    call_kwargs = {}
    if donate_input and out_dtype == x.dtype:
        # Reuse x's HBM buffer for the output (only valid if the caller no longer
        # needs x and the dtypes/shapes match).
        call_kwargs["input_output_aliases"] = {0: 0}

    out2 = pl.pallas_call(
        _kernel_weight_kernel,
        out_shape=jax.ShapeDtypeStruct((K, N), out_dtype),
        grid_spec=pltpu.PrefetchScalarGridSpec(
            num_scalar_prefetch=0,
            grid=(grid_n,),
            in_specs=[
                # streaming input: (K, tn) lane-dense tiles along N
                pl.BlockSpec((K, tn), lambda i: (0, i)),
                # resident weight: full (K, 1), constant block index => DMA'd once
                pl.BlockSpec((K, 1), lambda i: (0, 0)),
            ],
            out_specs=pl.BlockSpec((K, tn), lambda i: (0, i)),
        ),
        compiler_params=pltpu.CompilerParams(
            dimension_semantics=("parallel",),
            vmem_limit_bytes=vmem_limit,
        ),
        **call_kwargs,
    )(x2, w2)

    return out2.reshape(K, C, H, W)


class KernelWeight:
    """JAX port of network/MDIVDnet.py::kernel_weight."""

    def __init__(self, patchsize, key=None):
        K = patchsize ** 2
        if key is None:
            # The PyTorch module initializes the parameter to ones.
            self.it_weights = jnp.ones((K, 1, 1, 1), dtype=jnp.float32)
        else:
            # Deterministic non-trivial init so the multiply is visible in tests.
            self.it_weights = jax.random.normal(key, (K, 1, 1, 1), dtype=jnp.float32)

    def __call__(self, x):
        return kernel_weight_forward(x, self.it_weights)


if __name__ == "__main__":
    patchsize = 4            # K = 16
    C, H, W = 4, 16, 16      # small shapes; N = C*H*W = 1024

    key = jax.random.PRNGKey(0)
    kx, kw = jax.random.split(key)
    x = jax.random.normal(kx, (patchsize ** 2, C, H, W), dtype=jnp.float32)

    mod = KernelWeight(patchsize, key=kw)

    # f32 path
    y = jax.block_until_ready(mod(x))
    y_ref = x * mod.it_weights
    assert y.shape == x.shape and y.dtype == jnp.float32
    assert jnp.allclose(y, y_ref, atol=1e-6, rtol=1e-6)

    # bf16 input path: output promotes to f32 (PyTorch semantics: bf16 * f32 param)
    x_bf16 = x.astype(jnp.bfloat16)
    y_bf = jax.block_until_ready(mod(x_bf16))
    y_bf_ref = x_bf16 * mod.it_weights
    assert y_bf.shape == x.shape and y_bf.dtype == jnp.float32
    assert jnp.allclose(y_bf, y_bf_ref, atol=1e-6, rtol=1e-6)

    print("KERNEL_OK")
</pallas_src>

<mosaic_0001>
module attributes {stable_mosaic.version = 11 : i64} {
  func.func @_kernel_weight_kernel(%arg0: i32, %arg1: memref<16x512xf32, #tpu.memory_space<vmem>>, %arg2: memref<16x1xf32, #tpu.memory_space<vmem>>, %arg3: memref<16x512xf32, #tpu.memory_space<vmem>>) attributes {dimension_semantics = [#tpu.dimension_semantics<parallel>], iteration_bounds = array<i64: 2>, scalar_prefetch = 0 : i64, scratch_operands = 0 : i64, tpu.core_type = #tpu.core_type<tc>, window_params = [{transform_indices = @transform_0, window_bounds = array<i64: 16, 512>}, {pipeline_mode = #tpu.pipeline_mode<synchronous>, transform_indices = @transform_1, window_bounds = array<i64: 16, 1>}, {transform_indices = @transform_2, window_bounds = array<i64: 16, 512>}]} {
    %c0 = arith.constant 0 : index
    %c0_0 = arith.constant 0 : index
    %0 = vector.load %arg1[%c0, %c0_0] : memref<16x512xf32, #tpu.memory_space<vmem>>, vector<16x512xf32>
    %c0_1 = arith.constant 0 : index
    %c0_2 = arith.constant 0 : index
    %1 = vector.load %arg2[%c0_1, %c0_2] : memref<16x1xf32, #tpu.memory_space<vmem>>, vector<16x1xf32>
    %2 = vector.broadcast %1 : vector<16x1xf32> to vector<16x512xf32>
    %3 = arith.mulf %0, %2 : vector<16x512xf32>
    %c0_3 = arith.constant 0 : index
    %c0_4 = arith.constant 0 : index
    %4 = vector.load %arg3[%c0_3, %c0_4] : memref<16x512xf32, #tpu.memory_space<vmem>>, vector<16x512xf32>
    tpu.vector_store %arg3[%c0_3, %c0_4], %3 {strides = array<i32>} : memref<16x512xf32, #tpu.memory_space<vmem>>, vector<16x512xf32>,
    return
  }
  func.func @transform_0(%arg0: i32) -> (i32, i32) {
    %c0_i32 = arith.constant 0 : i32
    %c0_i32_0 = arith.constant 0 : i32
    return %c0_i32, %arg0 : i32, i32
  }
  func.func @transform_1(%arg0: i32) -> (i32, i32) {
    %c0_i32 = arith.constant 0 : i32
    %c0_i32_0 = arith.constant 0 : i32
    %c0_i32_1 = arith.constant 0 : i32
    return %c0_i32, %c0_i32_0 : i32, i32
  }
  func.func @transform_2(%arg0: i32) -> (i32, i32) {
    %c0_i32 = arith.constant 0 : i32
    %c0_i32_0 = arith.constant 0 : i32
    return %c0_i32, %arg0 : i32, i32
  }
}

</mosaic_0001>

<llo_original>
// kernel: tpu_custom_call.1
$region0: #{tpu_custom_call.1}
  #allocation0 [shape = 'u32[]', space=smem, size = 0x4, offset = 0x4, fixed_abs, tag = 'smem constant byte address 0x4 - core index']
  #allocation1 [shape = 'u32[144,128]{1,0:T(1,128)}', space=vmem, size = 0x12000, scoped, tag = 'internal scratch']
  %s0 = inlined_call_operand.hbm [shape: f32[16,1024], index: 0, kind: input, shape index: {}]
  %s1 = inlined_call_operand.vmem [shape: f32[16,1], index: 1, kind: input, shape index: {}]
  %s2 = inlined_call_operand.hbm [shape: f32[16,1024], index: 2, kind: output, shape index: {}]
  %s3 = sld [smem:[#allocation0]]
  $region45: #{tpu_custom_call.1} parent=0
    _
  %s5 = ssub.s32 1, %s3
  %s6 = scalar_select 0, %s5, %s3
  $region1: #{tpu_custom_call.1} parent=0
    #allocation2 [shape = 'u8[65536]{0}', space=vmem, size = 0x10000, scoped, tag = 'input window, operand 0']
    #allocation3 [shape = 's32[2]{0}', space=sflag, size = 0x8, scoped, tag = 'scoped memory for tpu_custom_call.1']
    #allocation4 [shape = 's32[2]{0}', space=sflag, size = 0x8, scoped, tag = 'scoped memory for tpu_custom_call.1']
    #allocation5 [shape = 'u8[65536]{0}', space=vmem, size = 0x10000, scoped, tag = 'output window, operand 0']
    %7 = vsyncpa [#allocation3], 0
    %s8 = scalar_lea.sflag [#allocation3], 1
    %9 = vsyncpa %s8, 0
    %10 = vsyncpa [#allocation4], 0
    %s11 = scalar_lea.sflag [#allocation4], 1
    %12 = vsyncpa %s11, 0
    loop: start=0, step=1, limit=4
    $region2: #{tpu_custom_call.1} parent=1 // loop_pre_header
      _
    $region3: #{tpu_custom_call.1} parent=1 // loop_header
      %s14 = sphi 0, %s18
      %p15 = scmp.ge.s32.totalorder %s14, 4
      %s24 = sphi 0, %s26
      %s27 = sphi 0, %s24
      %s28 = sphi 0, %s27
      %s44 = sphi 0, %s28
      %s48 = sphi 0, %s48
      %s50 = sphi 0, %s48
      %s51 = sphi 0, %s50
      %s65 = sphi 0, %s51
      %s71 = sphi 0, %s73
      %s74 = sphi 0, %s71
      %s75 = sphi 0, %s74
      %s91 = sphi 0, %s75
    $region4: #{tpu_custom_call.1} parent=1 // loop_header_branch
      %17 = sbr.rel (%p15) target = $region8
    $region5: #{tpu_custom_call.1} parent=1 // loop_body
      %s19 = ssub.s32 %s14, 1
      %s20 = ssub.s32 %s14, 2
      %s21 = sadd.s32 %s14, 1
      %s22 = ssub.s32 %s14, %s21
      %p23 = scmp.eq.s32.totalorder %s22, 0
      %s25 = sadd.s32 %s24, 1
      %s26 = scalar_select %p23, %s24, %s25
      %p29 = pneg %p23
      %p30 = scmp.eq.s32.totalorder %s14, 1
      %p31 = por %p29, %p30
      %p32 = scmp.ne.s32.totalorder %s24, %s27
      %p33 = scmp.eq.s32.totalorder %s14, 0
      %p34 = por %p32, %p33
      %p35 = scmp.ne.s32.totalorder %s24, %s27
      %p36 = scmp.eq.s32.totalorder %s19, 1
      %p37 = por %p35, %p36
      %p38 = scmp.ne.s32.totalorder %s27, %s28
      %p39 = scmp.eq.s32.totalorder %s19, 0
      %p40 = por %p38, %p39
      %p41 = scmp.ne.s32.totalorder %s27, %s28
      %p42 = scmp.eq.s32.totalorder %s20, 1
      %p43 = por %p41, %p42
      %p45 = scmp.ne.s32.totalorder %s28, %s44
      %p46 = scmp.eq.s32.totalorder %s20, 0
      %p47 = por %p45, %p46
      %s49 = sadd.s32 %s48, 1
      %p52 = scmp.eq.s32.totalorder %s14, 1
      %p53 = scmp.ne.s32.totalorder %s48, %s50
      %p54 = scmp.eq.s32.totalorder %s14, 0
      %p55 = por %p53, %p54
      %p56 = scmp.ne.s32.totalorder %s48, %s50
      %p57 = scmp.eq.s32.totalorder %s19, 1
      %p58 = por %p56, %p57
      %p59 = scmp.ne.s32.totalorder %s50, %s51
      %p60 = scmp.eq.s32.totalorder %s19, 0
      %p61 = por %p59, %p60
      %p62 = scmp.ne.s32.totalorder %s50, %s51
      %p63 = scmp.eq.s32.totalorder %s20, 1
      %p64 = por %p62, %p63
      %p66 = scmp.ne.s32.totalorder %s51, %s65
      %p67 = scmp.eq.s32.totalorder %s20, 0
      %p68 = por %p66, %p67
      %s69 = ssub.s32 %s14, %s21
      %p70 = scmp.eq.s32.totalorder %s69, 0
      %s72 = sadd.s32 %s71, 1
      %s73 = scalar_select %p70, %s71, %s72
      %p76 = pneg %p70
      %p77 = scmp.eq.s32.totalorder %s14, 1
      %p78 = por %p76, %p77
      %p79 = scmp.ne.s32.totalorder %s71, %s74
      %p80 = scmp.eq.s32.totalorder %s14, 0
      %p81 = por %p79, %p80
      %p82 = scmp.ne.s32.totalorder %s71, %s74
      %p83 = scmp.eq.s32.totalorder %s19, 1
      %p84 = por %p82, %p83
      %p85 = scmp.ne.s32.totalorder %s74, %s75
      %p86 = scmp.eq.s32.totalorder %s19, 0
      %p87 = por %p85, %p86
      %p88 = scmp.ne.s32.totalorder %s74, %s75
      %p89 = scmp.eq.s32.totalorder %s20, 1
      %p90 = por %p88, %p89
      %p92 = scmp.ne.s32.totalorder %s75, %s91
      %p93 = scmp.eq.s32.totalorder %s20, 0
      %p94 = por %p92, %p93
      %p95 = scmp.le.s32.totalorder 1, %s14
      %p96 = scmp.lt.s32.totalorder %s14, 3
      %p97 = pnand %p95, %p96
      %p98 = pneg %p97
      // Predicated region
      $region9: #{tpu_custom_call.1} parent=5 // pred_check
        _
      $region10: #{tpu_custom_call.1} parent=5 // pred_check_branch
        %100 = sbr.rel (%p97) target = $region12
      $region11: #{tpu_custom_call.1} parent=5 // pred_region
        %s101 = ssub.s32 %s14, 1
        // Predicated region
        $region13: #{tpu_custom_call.1} parent=11 // pred_check
          %p102 = pneg %p61
        $region14: #{tpu_custom_call.1} parent=11 // pred_check_branch
          %104 = sbr.rel (%p102) target = $region16
        $region15: #{tpu_custom_call.1} parent=11 // pred_region
          _
        $region16: #{tpu_custom_call.1} parent=11 // pred_fallthru
          _
      $region12: #{tpu_custom_call.1} parent=5 // pred_fallthru
        _
      %p105 = scmp.lt.s32.totalorder %s14, 2
      // Predicated region
      $region17: #{tpu_custom_call.1} parent=5 // pred_check
        %p106 = pneg %p105
      $region18: #{tpu_custom_call.1} parent=5 // pred_check_branch
        %108 = sbr.rel (%p106) target = $region20
      $region19: #{tpu_custom_call.1} parent=5 // pred_region
        // Predicated region
        $region21: #{tpu_custom_call.1} parent=19 // pred_check
          %p109 = pneg %p34
        $region22: #{tpu_custom_call.1} parent=19 // pred_check_branch
          %111 = sbr.rel (%p109) target = $region24
        $region23: #{tpu_custom_call.1} parent=19 // pred_region
          %s112 = sand.u32 %s24, 1
          %s113 = scalar_lea.sflag [#allocation3], %s112
          %s114 = sand.u32 %s24, 1
          %s115 = smul.addr %s114, 64
          %s116 = scalar_lea.vmem [#allocation2], %s115
          %s117 = smul.u32 4, %s14
          %s119 = ssub.s32 1024, 1024
          %120 = vsyncadd %s113, %s119
          %s121 = smul.addr %s117, 128
          %s122 = scalar_lea.hbm %s0, %s121
          %s123 = sshll.u32 %s116, 4
          %s124 = int_to_ptr.vmem [resolvable:$true] %s123
          %129 = dma.hbm_to_vmem [thread:$0]  %s122, 1024, %s124, %s113, 1024, 512, 32
        $region24: #{tpu_custom_call.1} parent=19 // pred_fallthru
          _
      $region20: #{tpu_custom_call.1} parent=5 // pred_fallthru
        _
      %p130 = scmp.le.s32.totalorder 1, %s14
      %p131 = scmp.lt.s32.totalorder %s14, 3
      %p132 = pnand %p130, %p131
      %p133 = pneg %p132
      // Predicated region
      $region25: #{tpu_custom_call.1} parent=5 // pred_check
        _
      $region26: #{tpu_custom_call.1} parent=5 // pred_check_branch
        %135 = sbr.rel (%p132) target = $region28
      $region27: #{tpu_custom_call.1} parent=5 // pred_region
        %s136 = ssub.s32 %s14, 1
        %s137 = sand.u32 %s27, 1
        %s138 = scalar_lea.sflag [#allocation3], %s137
        %s139 = sand.u32 %s27, 1
        %s140 = smul.addr %s139, 64
        %s141 = scalar_lea.vmem [#allocation2], %s140
        // Predicated region
        $region29: #{tpu_custom_call.1} parent=27 // pred_check
          %p142 = pneg %p40
        $region30: #{tpu_custom_call.1} parent=27 // pred_check_branch
          %144 = sbr.rel (%p142) target = $region32
        $region31: #{tpu_custom_call.1} parent=27 // pred_region
          %145 = dma.done %s138, 1024
        $region32: #{tpu_custom_call.1} parent=27 // pred_fallthru
          _
        %s146 = sand.u32 %s27, 1
        %s147 = scalar_lea.sflag [#allocation3], %s146
        %s148 = sand.u32 %s27, 1
        %s149 = smul.addr %s148, 64
        %s150 = scalar_lea.vmem [#allocation2], %s149
        %p151 = pneg %p40
        %p152 = pneg %p37
        %p153 = pneg %p61
        %p154 = pneg %p58
        %p155 = pneg %p87
        %p156 = pneg %p84
        %s157 = sand.u32 %s74, 1
        %s158 = scalar_lea.sflag [#allocation4], %s157
        %s159 = sand.u32 %s74, 1
        %s160 = smul.addr %s159, 64
        %s161 = scalar_lea.vmem [#allocation5], %s160
        %s162 = smul.u32 4, %s19
        %s163 = smul.u32 4, %s19
        %v164 = vld [vmem:[%s141] sm:$0xff]
        %v165 = vld [vmem:[%s141 + $0x8] sm:$0xff]
        %v166 = vld [vmem:[%s141 + $0x10] sm:$0xff]
        %v167 = vld [vmem:[%s141 + $0x18] sm:$0xff]
        %v168 = vld [vmem:[%s141 + $0x20] sm:$0xff]
        %v169 = vld [vmem:[%s141 + $0x28] sm:$0xff]
        %v170 = vld [vmem:[%s141 + $0x30] sm:$0xff]
        %v171 = vld [vmem:[%s141 + $0x38] sm:$0xff]
        %v172 = vld [vmem:[%s1] sm:$0xff]
        %v173 = vld [vmem:[%s1 + $0x8] sm:$0xff]
        %175 = vset.pattern.permute.xlu0 0
        %176 = vperm.xlu0 %175, %v172
        %v177 = vpop.permute.xlu0 %176
        %180 = vset.pattern.permute.xlu0 0
        %181 = vperm.xlu0 %180, %v173
        %v182 = vpop.permute.xlu0 %181
        %v184 = vmul.f32 %v164, %v177
        %v185 = vmul.f32 %v165, %v177
        %v186 = vmul.f32 %v166, %v177
        %v187 = vmul.f32 %v167, %v177
        %v188 = vmul.f32 %v168, %v182
        %v189 = vmul.f32 %v169, %v182
        %v190 = vmul.f32 %v170, %v182
        %v191 = vmul.f32 %v171, %v182
        %192 = vst [vmem:[%s161] sm:$0xff] %v184
        %193 = vst [vmem:[%s161 + $0x8] sm:$0xff] %v185
        %194 = vst [vmem:[%s161 + $0x10] sm:$0xff] %v186
        %195 = vst [vmem:[%s161 + $0x18] sm:$0xff] %v187
        %196 = vst [vmem:[%s161 + $0x20] sm:$0xff] %v188
        %197 = vst [vmem:[%s161 + $0x28] sm:$0xff] %v189
        %198 = vst [vmem:[%s161 + $0x30] sm:$0xff] %v190
        %199 = vst [vmem:[%s161 + $0x38] sm:$0xff] %v191
        %s200 = sand.u32 %s74, 1
        %s201 = scalar_lea.sflag [#allocation4], %s200
        %s202 = sand.u32 %s74, 1
        %s203 = smul.addr %s202, 64
        %s204 = scalar_lea.vmem [#allocation5], %s203
        // Predicated region
        $region33: #{tpu_custom_call.1} parent=27 // pred_check
          %p205 = pneg %p84
        $region34: #{tpu_custom_call.1} parent=27 // pred_check_branch
          %207 = sbr.rel (%p205) target = $region36
        $region35: #{tpu_custom_call.1} parent=27 // pred_region
          %s208 = smul.u32 4, %s19
          %s210 = ssub.s32 1024, 1024
          %211 = vsyncadd %s201, %s210
          %s212 = smul.addr %s208, 128
          %s213 = scalar_lea.hbm %s2, %s212
          %s214 = sshll.u32 %s204, 4
          %s215 = int_to_ptr.vmem [resolvable:$true] %s214
          %220 = dma.vmem_to_hbm [thread:$0]  %s215, 1024, %s213, %s201, 512, 1024, 32
        $region36: #{tpu_custom_call.1} parent=27 // pred_fallthru
          _
      $region28: #{tpu_custom_call.1} parent=5 // pred_fallthru
        _
      %p221 = scmp.le.s32.totalorder 2, %s14
      // Predicated region
      $region37: #{tpu_custom_call.1} parent=5 // pred_check
        %p222 = pneg %p221
      $region38: #{tpu_custom_call.1} parent=5 // pred_check_branch
        %224 = sbr.rel (%p222) target = $region40
      $region39: #{tpu_custom_call.1} parent=5 // pred_region
        %s225 = ssub.s32 %s14, 2
        // Predicated region
        $region41: #{tpu_custom_call.1} parent=39 // pred_check
          %p226 = pneg %p90
        $region42: #{tpu_custom_call.1} parent=39 // pred_check_branch
          %228 = sbr.rel (%p226) target = $region44
        $region43: #{tpu_custom_call.1} parent=39 // pred_region
          %s229 = sand.u32 %s75, 1
          %s230 = scalar_lea.sflag [#allocation4], %s229
          %s231 = sand.u32 %s75, 1
          %s232 = smul.addr %s231, 64
          %s233 = scalar_lea.vmem [#allocation5], %s232
          %234 = dma.done %s230, 1024
        $region44: #{tpu_custom_call.1} parent=39 // pred_fallthru
          _
      $region40: #{tpu_custom_call.1} parent=5 // pred_fallthru
        _
    $region6: #{tpu_custom_call.1} parent=1 // loop_footer
      %s18 = sadd.s32 1, %s14
    $region7: #{tpu_custom_call.1} parent=1 // loop_footer_branch
      %13 = sbr.rel target = $region3
    $region8: #{tpu_custom_call.1} parent=1 // loop_exit
      _
    %235 = vsyncpa [#allocation3], 1
    %s236 = scalar_lea.sflag [#allocation3], 1
    %237 = vsyncpa %s236, 1
    %238 = vsyncpa [#allocation4], 1
    %s239 = scalar_lea.sflag [#allocation4], 1
    %240 = vsyncpa %s239, 1

</llo_original>
